<compile_context>
chip_gen: v5e
topology: v5e:2x2
jax: 0.10.0
libtpu: 0.0.40
codegen_flags: <defaults>
</compile_context>

<pallas_src>
import functools

import jax
import jax.numpy as jnp
from jax import lax
from jax.experimental import pallas as pl
from jax.experimental.pallas import tpu as pltpu


_LANE = 128
_NEG_PAD = -1e30                       # class-padding logit value


def _cce_stats_kernel(logits_ref, target_ref, pred_ref, acc_ref, conf_ref,
                      pred_upd, conf_upd, *, n_bins):
    step = pl.program_id(1)

    @pl.when(step == 0)
    def _init():
        pred_ref[...] = jnp.zeros_like(pred_ref)
        acc_ref[...] = jnp.zeros_like(acc_ref)
        conf_ref[...] = jnp.zeros_like(conf_ref)

    logits = logits_ref[...].astype(jnp.float32)             # (TB, Cp)
    tb, cp = logits.shape
    tgt = target_ref[...]                                     # (TB, 1) int32
    valid = tgt >= 0                                          # padded rows carry target = -1

    # Row-wise softmax.  The reciprocal is per-row (negligible cost); keep it exact so
    # bin assignment near a boundary cannot drift from the reference softmax.
    m = jnp.max(logits, axis=1, keepdims=True)
    e = jnp.exp(logits - m)
    inv = pl.reciprocal(jnp.sum(e, axis=1, keepdims=True), approx=False)
    probs = e * inv                                           # (TB, Cp)

    nb = float(n_bins)
    # Bin i covers (i/n_bins, (i+1)/n_bins]  =>  bin = ceil(p*n_bins) - 1; p == 0 -> -1
    # (no bin).  Clamp to n_bins-1 so p rounding slightly above 1.0 stays in the last bin.
    bin_idx = jnp.ceil(probs * nb).astype(jnp.int32) - 1      # (TB, Cp)
    bin_idx = jnp.minimum(bin_idx, n_bins - 1)
    bin_idx = jnp.where(valid, bin_idx, -1)                   # drop padded rows once

    # ---- acc update on the MXU (removed from the per-bin VPU loop) -------------------
    cls_iota = lax.broadcasted_iota(jnp.int32, (tb, cp), 1)
    is_tgt = cls_iota == tgt                                  # (TB, Cp) bool
    p_tgt = jnp.sum(jnp.where(is_tgt, probs, 0.0), axis=1, keepdims=True)   # (TB, 1)
    tgt_bin = jnp.minimum(jnp.ceil(p_tgt * nb).astype(jnp.int32) - 1, n_bins - 1)
    tgt_bin = jnp.where(valid, tgt_bin, -1)                   # (TB, 1)
    bins_iota = lax.broadcasted_iota(jnp.int32, (tb, n_bins), 1)
    bin1hot = (bins_iota == tgt_bin).astype(jnp.bfloat16)     # (TB, n_bins), exact 0/1
    onehot = is_tgt.astype(jnp.bfloat16)                      # (TB, Cp),    exact 0/1
    acc_ref[...] += lax.dot_general(                          # (n_bins, Cp), f32 accum
        bin1hot, onehot,
        dimension_numbers=(((0,), (0,)), ((), ())),
        preferred_element_type=jnp.float32)

    # ---- pred / conf: per-bin rows set into VMEM scratch, one full-tile += per step --
    # TODO(synk): on v6e/v7x evaluate packed-bf16 compare/select with f32-only batch
    # accumulation (not applicable to v5e, which has no bf16 VPU).
    def bin_body(i, carry):
        in_bin = bin_idx == i                                 # (TB, Cp) bool
        pred_upd[pl.ds(i, 1), :] = jnp.sum(
            jnp.where(in_bin, 1.0, 0.0), axis=0, keepdims=True)
        conf_upd[pl.ds(i, 1), :] = jnp.sum(
            jnp.where(in_bin, probs, 0.0), axis=0, keepdims=True)
        return carry

    lax.fori_loop(0, n_bins, bin_body, None, unroll=True)
    pred_ref[...] += pred_upd[...]
    conf_ref[...] += conf_upd[...]


def _vmem_capacity_bytes():
    try:
        info = pltpu.get_tpu_info()
        cap = getattr(info, "vmem_capacity_bytes", None)
        if cap:
            return int(cap)
    except Exception:
        pass
    return 64 * 1024 * 1024            # conservative default (v7x per-TensorCore VMEM)


def _num_tensorcores():
    """TensorCores addressable by a single Pallas kernel (megacore / v7x -> 2)."""
    try:
        kind = jax.devices()[0].device_kind.lower()
    except Exception:
        kind = ""
    if any(tag in kind for tag in ("v4", "v5p", "v7", "7x")):
        return 2
    return 1                           # v5e / v6e: single TensorCore


def _vmem_plan():
    cap = _vmem_capacity_bytes()
    if cap >= 100 * (1 << 20):         # v5e / v6e: 128 MiB physical VMEM
        vmem_limit = 80 * (1 << 20)
        row_cap = 8192
    else:                              # v7x: 64 MiB per TensorCore
        vmem_limit = 44 * (1 << 20)
        row_cap = 2048
    data_budget = (vmem_limit * 3) // 4
    return vmem_limit, data_budget, row_cap


def _choose_tile_b(batch, c_pad, n_bins, in_itemsize, data_budget, row_cap):
    """Largest batch tile whose *full* working set fits the VMEM budget:
    double-buffered input tile + target + ~8 f32 row-copies of in-kernel temporaries
    (logits_f32, e, probs, bin_idx, bool masks, bf16 one-hot, where-products) +
    resident accumulator slabs and scratch update tiles."""
    per_row = 2 * (c_pad * in_itemsize + 4) + 8 * c_pad * 4
    fixed = (2 * 3 + 2) * n_bins * c_pad * 4 + (1 << 20)
    tile = (data_budget - fixed) // per_row
    tile = max(8, min(int(tile), row_cap))
    tile = (tile // 8) * 8
    tile = min(tile, max(8, ((batch + 7) // 8) * 8))
    return tile


def cce_loss_fast(logits, target, *, n_bins=10, loss_type='sce', tile_b=None):
    """Returns (loss_scalar, no_pred[C, n_bins], no_acc[C, n_bins], conf_sum[C, n_bins])."""
    assert loss_type in ('sce', 'kernel', 'diff')
    B, C = logits.shape
    if logits.dtype != jnp.bfloat16:
        logits = logits.astype(jnp.float32)    # bf16 kept as-is (half the HBM traffic)
    target = target.astype(jnp.int32)

    # Pad classes to a lane-dense multiple of 128; padded columns get a very negative
    # logit so the softmax over real classes is unchanged and padded probs (== 0) fall
    # in no bin and contribute nothing to the statistics.
    Cp = max(_LANE, ((C + _LANE - 1) // _LANE) * _LANE)
    if Cp != C:
        logits = jnp.pad(logits, ((0, 0), (0, Cp - C)), constant_values=_NEG_PAD)

    vmem_limit, data_budget, row_cap = _vmem_plan()
    if tile_b is None:
        tile_b = _choose_tile_b(B, Cp, n_bins, logits.dtype.itemsize,
                                data_budget, row_cap)
    # TODO(synk): for vocab-scale C add a class-tile grid axis (needs a two-pass softmax).

    steps = -(-B // tile_b)
    n_tc = _num_tensorcores()
    n_splits = n_tc if steps >= n_tc else 1        # split only where a 2nd TC exists
    steps_per_split = -(-steps // n_splits)
    Bp = n_splits * steps_per_split * tile_b
    if Bp != B:
        logits = jnp.pad(logits, ((0, Bp - B), (0, 0)))
        target = jnp.pad(target, (0, Bp - B), constant_values=-1)
    target2d = target.reshape(Bp, 1)

    kernel = functools.partial(_cce_stats_kernel, n_bins=n_bins)

    out_shape = (
        jax.ShapeDtypeStruct((n_splits, n_bins, Cp), jnp.float32),   # no_pred
        jax.ShapeDtypeStruct((n_splits, n_bins, Cp), jnp.float32),   # no_acc
        jax.ShapeDtypeStruct((n_splits, n_bins, Cp), jnp.float32),   # conf_sum
    )

    itemsize = logits.dtype.itemsize
    cost = pl.CostEstimate(
        flops=int(Bp) * Cp * (12 + 4 * n_bins) + 2 * int(Bp) * n_bins * Cp,
        transcendentals=int(Bp) * Cp,
        bytes_accessed=int(Bp) * Cp * itemsize + int(Bp) * 4
        + 3 * n_splits * n_bins * Cp * 4,
    )

    batch_map = lambda c, b: (c * steps_per_split + b, 0)
    stat_spec = pl.BlockSpec((None, n_bins, Cp), lambda c, b: (c, 0, 0))

    pred_s, acc_s, conf_s = pl.pallas_call(
        kernel,
        out_shape=out_shape,
        grid_spec=pltpu.PrefetchScalarGridSpec(
            num_scalar_prefetch=0,
            grid=(n_splits, steps_per_split),
            in_specs=[
                pl.BlockSpec((tile_b, Cp), batch_map),
                pl.BlockSpec((tile_b, 1), batch_map),
            ],
            out_specs=[stat_spec, stat_spec, stat_spec],
            scratch_shapes=[
                pltpu.VMEM((n_bins, Cp), jnp.float32),   # per-step pred update
                pltpu.VMEM((n_bins, Cp), jnp.float32),   # per-step conf update
            ]),
        compiler_params=pltpu.CompilerParams(
            dimension_semantics=("parallel", "arbitrary"),
            vmem_limit_bytes=vmem_limit),
        cost_estimate=cost,
    )(logits, target2d)

    # Sum the per-core slabs and drop class padding; the remaining reduction over a tiny
    # (n_bins, C) slab is cheap in plain JAX (matches the module's loss math).
    pred = jnp.sum(pred_s, axis=0)[:, :C]
    acc = jnp.sum(acc_s, axis=0)[:, :C]
    conf = jnp.sum(conf_s, axis=0)[:, :C]

    avg_acc = acc / (pred + 1e-13)
    avg_conf = conf / (pred + 1e-13)
    total = jnp.sum(pred)
    if loss_type == 'sce':
        loss = jnp.sum(jnp.abs(avg_acc - avg_conf) * pred / total)
    elif loss_type == 'kernel':
        loss = jnp.sum((1.0 - jnp.exp(-(avg_acc - avg_conf) ** 2 / 0.5)) * (pred / total))
    else:  # 'diff'
        loss = jnp.sum((avg_acc - avg_conf) ** 2)

    # PyTorch module's (n_classes, n_bins) layout
    return loss, pred.T, acc.T, conf.T


def _reference(logits, target, n_bins=10, loss_type='sce'):
    """Pure-JAX reference mirroring the PyTorch forward."""
    probs = jax.nn.softmax(logits.astype(jnp.float32), axis=1)
    B, C = probs.shape
    onehot = (target[:, None] == jnp.arange(C)[None, :]).astype(jnp.float32)
    pred = jnp.zeros((C, n_bins))
    acc = jnp.zeros((C, n_bins))
    conf = jnp.zeros((C, n_bins))
    for i in range(n_bins):
        lo, hi = i / n_bins, (i + 1) / n_bins
        mask = ((probs > lo) & (probs <= hi)).astype(jnp.float32)
        pred = pred.at[:, i].set(jnp.sum(mask, axis=0))
        acc = acc.at[:, i].set(jnp.sum(mask * onehot, axis=0))
        conf = conf.at[:, i].set(jnp.sum(mask * probs, axis=0))
    avg_acc = acc / (pred + 1e-13)
    avg_conf = conf / (pred + 1e-13)
    if loss_type == 'sce':
        loss = jnp.sum(jnp.abs(avg_acc - avg_conf) * pred / jnp.sum(pred))
    elif loss_type == 'kernel':
        loss = jnp.sum((1 - jnp.exp(-(avg_acc - avg_conf) ** 2 / 0.5)) * (pred / jnp.sum(pred)))
    else:
        loss = jnp.sum((avg_acc - avg_conf) ** 2)
    return loss, pred, acc, conf


if __name__ == "__main__":
    # small shapes consistent with the module: batch=8, n_classes=4, n_bins=10
    B, C, N_BINS = 8, 4, 10
    key = jax.random.PRNGKey(0)
    k1, k2, k3, k4 = jax.random.split(key, 4)
    logits = jax.random.normal(k1, (B, C), dtype=jnp.float32) * 2.0
    target = jax.random.randint(k2, (B,), 0, C, dtype=jnp.int32)

    loss, no_pred, no_acc, conf_sum = cce_loss_fast(
        logits, target, n_bins=N_BINS, loss_type='sce')
    jax.block_until_ready((loss, no_pred, no_acc, conf_sum))

    loss_r, pred_r, acc_r, conf_r = _reference(logits, target, N_BINS, 'sce')
    assert jnp.allclose(loss, loss_r, atol=1e-5), (loss, loss_r)
    assert jnp.allclose(no_pred, pred_r, atol=1e-5)
    assert jnp.allclose(no_acc, acc_r, atol=1e-5)
    assert jnp.allclose(conf_sum, conf_r, atol=1e-4)

    # second check: multi-step grid (accumulation across batch tiles) + padded rows
    B2, C2 = 37, 4
    logits2 = jax.random.normal(k3, (B2, C2), dtype=jnp.float32) * 2.0
    target2 = jax.random.randint(k4, (B2,), 0, C2, dtype=jnp.int32)
    loss2, pred2, acc2, conf2 = cce_loss_fast(
        logits2, target2, n_bins=N_BINS, loss_type='sce', tile_b=8)
    jax.block_until_ready((loss2, pred2, acc2, conf2))
    loss2_r, pred2_r, acc2_r, conf2_r = _reference(logits2, target2, N_BINS, 'sce')
    assert jnp.allclose(loss2, loss2_r, atol=1e-5), (loss2, loss2_r)
    assert jnp.allclose(pred2, pred2_r, atol=1e-5)
    assert jnp.allclose(acc2, acc2_r, atol=1e-5)
    assert jnp.allclose(conf2, conf2_r, atol=1e-4)

    print("KERNEL_OK")
</pallas_src>

<mosaic_0001>
module attributes {stable_mosaic.version = 11 : i64} {
  func.func @_cce_stats_kernel(%arg0: i32, %arg1: i32, %arg2: memref<8x128xf32, #tpu.memory_space<vmem>>, %arg3: memref<8x1xi32, #tpu.memory_space<vmem>>, %arg4: memref<1x10x128xf32, #tpu.memory_space<vmem>>, %arg5: memref<1x10x128xf32, #tpu.memory_space<vmem>>, %arg6: memref<1x10x128xf32, #tpu.memory_space<vmem>>, %arg7: memref<10x128xf32, #tpu.memory_space<vmem>>, %arg8: memref<10x128xf32, #tpu.memory_space<vmem>>) attributes {dimension_semantics = [#tpu.dimension_semantics<parallel>, #tpu.dimension_semantics<arbitrary>], iteration_bounds = array<i64: 1, 1>, scalar_prefetch = 0 : i64, scratch_operands = 2 : i64, tpu.core_type = #tpu.core_type<tc>, window_params = [{transform_indices = @transform_0, window_bounds = array<i64: 8, 128>}, {transform_indices = @transform_1, window_bounds = array<i64: 8, 1>}, {transform_indices = @transform_2, window_bounds = array<i64: 1, 10, 128>}, {transform_indices = @transform_3, window_bounds = array<i64: 1, 10, 128>}, {transform_indices = @transform_4, window_bounds = array<i64: 1, 10, 128>}]} {
    %c0_i32 = arith.constant 0 : i32
    %0 = arith.cmpi eq, %arg1, %c0_i32 : i32
    %1 = arith.extui %0 : i1 to i32
    %c0_i32_0 = arith.constant 0 : i32
    %2 = arith.cmpi ne, %1, %c0_i32_0 : i32
    scf.if %2 {
      %cst_109 = arith.constant 0.000000e+00 : f32
      %226 = vector.broadcast %cst_109 : f32 to vector<10x128xf32>
      %c0_110 = arith.constant 0 : index
      %c0_111 = arith.constant 0 : index
      %c0_112 = arith.constant 0 : index
      %227 = vector.load %arg4[%c0_110, %c0_111, %c0_112] : memref<1x10x128xf32, #tpu.memory_space<vmem>>, vector<1x10x128xf32>
      %228 = vector.shape_cast %227 : vector<1x10x128xf32> to vector<10x128xf32>
      %229 = vector.shape_cast %226 : vector<10x128xf32> to vector<1x10x128xf32>
      tpu.vector_store %arg4[%c0_110, %c0_111, %c0_112], %229 {strides = array<i32>} : memref<1x10x128xf32, #tpu.memory_space<vmem>>, vector<1x10x128xf32>,
      %cst_113 = arith.constant 0.000000e+00 : f32
      %230 = vector.broadcast %cst_113 : f32 to vector<10x128xf32>
      %c0_114 = arith.constant 0 : index
      %c0_115 = arith.constant 0 : index
      %c0_116 = arith.constant 0 : index
      %231 = vector.load %arg5[%c0_114, %c0_115, %c0_116] : memref<1x10x128xf32, #tpu.memory_space<vmem>>, vector<1x10x128xf32>
      %232 = vector.shape_cast %231 : vector<1x10x128xf32> to vector<10x128xf32>
      %233 = vector.shape_cast %230 : vector<10x128xf32> to vector<1x10x128xf32>
      tpu.vector_store %arg5[%c0_114, %c0_115, %c0_116], %233 {strides = array<i32>} : memref<1x10x128xf32, #tpu.memory_space<vmem>>, vector<1x10x128xf32>,
      %cst_117 = arith.constant 0.000000e+00 : f32
      %234 = vector.broadcast %cst_117 : f32 to vector<10x128xf32>
      %c0_118 = arith.constant 0 : index
      %c0_119 = arith.constant 0 : index
      %c0_120 = arith.constant 0 : index
      %235 = vector.load %arg6[%c0_118, %c0_119, %c0_120] : memref<1x10x128xf32, #tpu.memory_space<vmem>>, vector<1x10x128xf32>
      %236 = vector.shape_cast %235 : vector<1x10x128xf32> to vector<10x128xf32>
      %237 = vector.shape_cast %234 : vector<10x128xf32> to vector<1x10x128xf32>
      tpu.vector_store %arg6[%c0_118, %c0_119, %c0_120], %237 {strides = array<i32>} : memref<1x10x128xf32, #tpu.memory_space<vmem>>, vector<1x10x128xf32>,
    } else {
    }
    %c0 = arith.constant 0 : index
    %c0_1 = arith.constant 0 : index
    %3 = vector.load %arg2[%c0, %c0_1] : memref<8x128xf32, #tpu.memory_space<vmem>>, vector<8x128xf32>
    %c0_2 = arith.constant 0 : index
    %c0_3 = arith.constant 0 : index
    %4 = vector.load %arg3[%c0_2, %c0_3] : memref<8x1xi32, #tpu.memory_space<vmem>>, vector<8x1xi32>
    %c0_i32_4 = arith.constant 0 : i32
    %5 = vector.broadcast %c0_i32_4 : i32 to vector<8x1xi32>
    %6 = arith.cmpi sge, %4, %5 : vector<8x1xi32>
    %cst = arith.constant dense<0xFF800000> : vector<8xf32>
    %7 = vector.multi_reduction <maximumf>, %3, %cst [1] : vector<8x128xf32> to vector<8xf32>
    %8 = vector.shape_cast %7 : vector<8xf32> to vector<8x1xf32>
    %9 = vector.broadcast %8 : vector<8x1xf32> to vector<8x128xf32>
    %10 = arith.subf %3, %9 : vector<8x128xf32>
    %11 = math.exp %10 : vector<8x128xf32>
    %cst_5 = arith.constant dense<0.000000e+00> : vector<8xf32>
    %12 = vector.multi_reduction <add>, %11, %cst_5 [1] : vector<8x128xf32> to vector<8xf32>
    %13 = vector.shape_cast %12 : vector<8xf32> to vector<8x1xf32>
    %14 = tpu.reciprocal %13 : vector<8x1xf32> -> vector<8x1xf32>
    %15 = vector.broadcast %14 : vector<8x1xf32> to vector<8x128xf32>
    %16 = arith.mulf %11, %15 : vector<8x128xf32>
    %cst_6 = arith.constant 1.000000e+01 : f32
    %17 = vector.broadcast %cst_6 : f32 to vector<8x128xf32>
    %18 = arith.mulf %16, %17 : vector<8x128xf32>
    %19 = math.ceil %18 : vector<8x128xf32>
    %20 = arith.fptosi %19 : vector<8x128xf32> to vector<8x128xi32>
    %c1_i32 = arith.constant 1 : i32
    %21 = vector.broadcast %c1_i32 : i32 to vector<8x128xi32>
    %22 = arith.subi %20, %21 : vector<8x128xi32>
    %c9_i32 = arith.constant 9 : i32
    %23 = vector.broadcast %c9_i32 : i32 to vector<8x128xi32>
    %24 = arith.minsi %22, %23 : vector<8x128xi32>
    %c-1_i32 = arith.constant -1 : i32
    %25 = vector.shape_cast %6 : vector<8x1xi1> to vector<8x1xi1>
    %26 = vector.broadcast %25 : vector<8x1xi1> to vector<8x128xi1>
    %27 = vector.broadcast %c-1_i32 : i32 to vector<8x128xi32>
    %28 = arith.select %26, %24, %27 : vector<8x128xi1>, vector<8x128xi32>
    %29 = tpu.iota {dimensions = array<i32: 1>} : vector<8x128xi32>
    %30 = vector.broadcast %4 : vector<8x1xi32> to vector<8x128xi32>
    %31 = arith.cmpi eq, %29, %30 : vector<8x128xi32>
    %cst_7 = arith.constant 0.000000e+00 : f32
    %32 = vector.broadcast %cst_7 : f32 to vector<8x128xf32>
    %33 = arith.select %31, %16, %32 : vector<8x128xi1>, vector<8x128xf32>
    %cst_8 = arith.constant dense<0.000000e+00> : vector<8xf32>
    %34 = vector.multi_reduction <add>, %33, %cst_8 [1] : vector<8x128xf32> to vector<8xf32>
    %35 = vector.shape_cast %34 : vector<8xf32> to vector<8x1xf32>
    %cst_9 = arith.constant 1.000000e+01 : f32
    %36 = vector.broadcast %cst_9 : f32 to vector<8x1xf32>
    %37 = arith.mulf %35, %36 : vector<8x1xf32>
    %38 = math.ceil %37 : vector<8x1xf32>
    %39 = arith.fptosi %38 : vector<8x1xf32> to vector<8x1xi32>
    %c1_i32_10 = arith.constant 1 : i32
    %40 = vector.broadcast %c1_i32_10 : i32 to vector<8x1xi32>
    %41 = arith.subi %39, %40 : vector<8x1xi32>
    %c9_i32_11 = arith.constant 9 : i32
    %42 = vector.broadcast %c9_i32_11 : i32 to vector<8x1xi32>
    %43 = arith.minsi %41, %42 : vector<8x1xi32>
    %c-1_i32_12 = arith.constant -1 : i32
    %44 = vector.broadcast %c-1_i32_12 : i32 to vector<8x1xi32>
    %45 = arith.select %6, %43, %44 : vector<8x1xi1>, vector<8x1xi32>
    %46 = tpu.iota {dimensions = array<i32: 1>} : vector<8x10xi32>
    %47 = vector.broadcast %45 : vector<8x1xi32> to vector<8x10xi32>
    %48 = arith.cmpi eq, %46, %47 : vector<8x10xi32>
    %49 = arith.extui %48 : vector<8x10xi1> to vector<8x10xi32>
    %50 = arith.sitofp %49 : vector<8x10xi32> to vector<8x10xf32>
    %51 = arith.truncf %50 : vector<8x10xf32> to vector<8x10xbf16>
    %52 = arith.extui %31 : vector<8x128xi1> to vector<8x128xi32>
    %53 = arith.sitofp %52 : vector<8x128xi32> to vector<8x128xf32>
    %54 = arith.truncf %53 : vector<8x128xf32> to vector<8x128xbf16>
    %c0_13 = arith.constant 0 : index
    %c0_14 = arith.constant 0 : index
    %c0_15 = arith.constant 0 : index
    %55 = vector.load %arg5[%c0_13, %c0_14, %c0_15] : memref<1x10x128xf32, #tpu.memory_space<vmem>>, vector<1x10x128xf32>
    %56 = vector.shape_cast %55 : vector<1x10x128xf32> to vector<10x128xf32>
    %cst_16 = arith.constant dense<0.000000e+00> : vector<10x128xf32>
    %57 = tpu.matmul %51, %54, %cst_16 {dimension_numbers = #tpu.dot_dimension_numbers<[0], [0], [1], [1], [0, 1, 1, 1], [], []>} : vector<8x10xbf16>, vector<8x128xbf16>, vector<10x128xf32> -> vector<10x128xf32>
    %58 = arith.addf %56, %57 : vector<10x128xf32>
    %c0_17 = arith.constant 0 : index
    %c0_18 = arith.constant 0 : index
    %c0_19 = arith.constant 0 : index
    %59 = vector.load %arg5[%c0_17, %c0_18, %c0_19] : memref<1x10x128xf32, #tpu.memory_space<vmem>>, vector<1x10x128xf32>
    %60 = vector.shape_cast %59 : vector<1x10x128xf32> to vector<10x128xf32>
    %61 = vector.shape_cast %58 : vector<10x128xf32> to vector<1x10x128xf32>
    tpu.vector_store %arg5[%c0_17, %c0_18, %c0_19], %61 {strides = array<i32>} : memref<1x10x128xf32, #tpu.memory_space<vmem>>, vector<1x10x128xf32>,
    %c0_i32_20 = arith.constant 0 : i32
    %62 = vector.broadcast %c0_i32_20 : i32 to vector<8x128xi32>
    %63 = arith.cmpi eq, %28, %62 : vector<8x128xi32>
    %cst_21 = arith.constant 1.000000e+00 : f32
    %cst_22 = arith.constant 0.000000e+00 : f32
    %64 = vector.broadcast %cst_21 : f32 to vector<8x128xf32>
    %65 = vector.broadcast %cst_22 : f32 to vector<8x128xf32>
    %66 = arith.select %63, %64, %65 : vector<8x128xi1>, vector<8x128xf32>
    %cst_23 = arith.constant dense<0.000000e+00> : vector<128xf32>
    %67 = vector.multi_reduction <add>, %66, %cst_23 [0] : vector<8x128xf32> to vector<128xf32>
    %68 = vector.shape_cast %67 : vector<128xf32> to vector<1x128xf32>
    %69 = arith.index_cast %c0_i32_20 : i32 to index
    %c0_24 = arith.constant 0 : index
    %70 = vector.load %arg7[%69, %c0_24] : memref<10x128xf32, #tpu.memory_space<vmem>>, vector<1x128xf32>
    tpu.vector_store %arg7[%69, %c0_24], %68 {strides = array<i32>} : memref<10x128xf32, #tpu.memory_space<vmem>>, vector<1x128xf32>,
    %cst_25 = arith.constant 0.000000e+00 : f32
    %71 = vector.broadcast %cst_25 : f32 to vector<8x128xf32>
    %72 = arith.select %63, %16, %71 : vector<8x128xi1>, vector<8x128xf32>
    %cst_26 = arith.constant dense<0.000000e+00> : vector<128xf32>
    %73 = vector.multi_reduction <add>, %72, %cst_26 [0] : vector<8x128xf32> to vector<128xf32>
    %74 = vector.shape_cast %73 : vector<128xf32> to vector<1x128xf32>
    %75 = arith.index_cast %c0_i32_20 : i32 to index
    %c0_27 = arith.constant 0 : index
    %76 = vector.load %arg8[%75, %c0_27] : memref<10x128xf32, #tpu.memory_space<vmem>>, vector<1x128xf32>
    tpu.vector_store %arg8[%75, %c0_27], %74 {strides = array<i32>} : memref<10x128xf32, #tpu.memory_space<vmem>>, vector<1x128xf32>,
    %c1_i32_28 = arith.constant 1 : i32
    %77 = vector.broadcast %c1_i32_28 : i32 to vector<8x128xi32>
    %78 = arith.cmpi eq, %28, %77 : vector<8x128xi32>
    %cst_29 = arith.constant 1.000000e+00 : f32
    %cst_30 = arith.constant 0.000000e+00 : f32
    %79 = vector.broadcast %cst_29 : f32 to vector<8x128xf32>
    %80 = vector.broadcast %cst_30 : f32 to vector<8x128xf32>
    %81 = arith.select %78, %79, %80 : vector<8x128xi1>, vector<8x128xf32>
    %cst_31 = arith.constant dense<0.000000e+00> : vector<128xf32>
    %82 = vector.multi_reduction <add>, %81, %cst_31 [0] : vector<8x128xf32> to vector<128xf32>
    %83 = vector.shape_cast %82 : vector<128xf32> to vector<1x128xf32>
    %84 = arith.index_cast %c1_i32_28 : i32 to index
    %c0_32 = arith.constant 0 : index
    %85 = vector.load %arg7[%84, %c0_32] : memref<10x128xf32, #tpu.memory_space<vmem>>, vector<1x128xf32>
    tpu.vector_store %arg7[%84, %c0_32], %83 {strides = array<i32>} : memref<10x128xf32, #tpu.memory_space<vmem>>, vector<1x128xf32>,
    %cst_33 = arith.constant 0.000000e+00 : f32
    %86 = vector.broadcast %cst_33 : f32 to vector<8x128xf32>
    %87 = arith.select %78, %16, %86 : vector<8x128xi1>, vector<8x128xf32>
    %cst_34 = arith.constant dense<0.000000e+00> : vector<128xf32>
    %88 = vector.multi_reduction <add>, %87, %cst_34 [0] : vector<8x128xf32> to vector<128xf32>
    %89 = vector.shape_cast %88 : vector<128xf32> to vector<1x128xf32>
    %90 = arith.index_cast %c1_i32_28 : i32 to index
    %c0_35 = arith.constant 0 : index
    %91 = vector.load %arg8[%90, %c0_35] : memref<10x128xf32, #tpu.memory_space<vmem>>, vector<1x128xf32>
    tpu.vector_store %arg8[%90, %c0_35], %89 {strides = array<i32>} : memref<10x128xf32, #tpu.memory_space<vmem>>, vector<1x128xf32>,
    %c2_i32 = arith.constant 2 : i32
    %92 = vector.broadcast %c2_i32 : i32 to vector<8x128xi32>
    %93 = arith.cmpi eq, %28, %92 : vector<8x128xi32>
    %cst_36 = arith.constant 1.000000e+00 : f32
    %cst_37 = arith.constant 0.000000e+00 : f32
    %94 = vector.broadcast %cst_36 : f32 to vector<8x128xf32>
    %95 = vector.broadcast %cst_37 : f32 to vector<8x128xf32>
    %96 = arith.select %93, %94, %95 : vector<8x128xi1>, vector<8x128xf32>
    %cst_38 = arith.constant dense<0.000000e+00> : vector<128xf32>
    %97 = vector.multi_reduction <add>, %96, %cst_38 [0] : vector<8x128xf32> to vector<128xf32>
    %98 = vector.shape_cast %97 : vector<128xf32> to vector<1x128xf32>
    %99 = arith.index_cast %c2_i32 : i32 to index
    %c0_39 = arith.constant 0 : index
    %100 = vector.load %arg7[%99, %c0_39] : memref<10x128xf32, #tpu.memory_space<vmem>>, vector<1x128xf32>
    tpu.vector_store %arg7[%99, %c0_39], %98 {strides = array<i32>} : memref<10x128xf32, #tpu.memory_space<vmem>>, vector<1x128xf32>,
    %cst_40 = arith.constant 0.000000e+00 : f32
    %101 = vector.broadcast %cst_40 : f32 to vector<8x128xf32>
    %102 = arith.select %93, %16, %101 : vector<8x128xi1>, vector<8x128xf32>
    %cst_41 = arith.constant dense<0.000000e+00> : vector<128xf32>
    %103 = vector.multi_reduction <add>, %102, %cst_41 [0] : vector<8x128xf32> to vector<128xf32>
    %104 = vector.shape_cast %103 : vector<128xf32> to vector<1x128xf32>
    %105 = arith.index_cast %c2_i32 : i32 to index
    %c0_42 = arith.constant 0 : index
    %106 = vector.load %arg8[%105, %c0_42] : memref<10x128xf32, #tpu.memory_space<vmem>>, vector<1x128xf32>
    tpu.vector_store %arg8[%105, %c0_42], %104 {strides = array<i32>} : memref<10x128xf32, #tpu.memory_space<vmem>>, vector<1x128xf32>,
    %c3_i32 = arith.constant 3 : i32
    %107 = vector.broadcast %c3_i32 : i32 to vector<8x128xi32>
    %108 = arith.cmpi eq, %28, %107 : vector<8x128xi32>
    %cst_43 = arith.constant 1.000000e+00 : f32
    %cst_44 = arith.constant 0.000000e+00 : f32
    %109 = vector.broadcast %cst_43 : f32 to vector<8x128xf32>
    %110 = vector.broadcast %cst_44 : f32 to vector<8x128xf32>
    %111 = arith.select %108, %109, %110 : vector<8x128xi1>, vector<8x128xf32>
    %cst_45 = arith.constant dense<0.000000e+00> : vector<128xf32>
    %112 = vector.multi_reduction <add>, %111, %cst_45 [0] : vector<8x128xf32> to vector<128xf32>
    %113 = vector.shape_cast %112 : vector<128xf32> to vector<1x128xf32>
    %114 = arith.index_cast %c3_i32 : i32 to index
    %c0_46 = arith.constant 0 : index
    %115 = vector.load %arg7[%114, %c0_46] : memref<10x128xf32, #tpu.memory_space<vmem>>, vector<1x128xf32>
    tpu.vector_store %arg7[%114, %c0_46], %113 {strides = array<i32>} : memref<10x128xf32, #tpu.memory_space<vmem>>, vector<1x128xf32>,
    %cst_47 = arith.constant 0.000000e+00 : f32
    %116 = vector.broadcast %cst_47 : f32 to vector<8x128xf32>
    %117 = arith.select %108, %16, %116 : vector<8x128xi1>, vector<8x128xf32>
    %cst_48 = arith.constant dense<0.000000e+00> : vector<128xf32>
    %118 = vector.multi_reduction <add>, %117, %cst_48 [0] : vector<8x128xf32> to vector<128xf32>
    %119 = vector.shape_cast %118 : vector<128xf32> to vector<1x128xf32>
    %120 = arith.index_cast %c3_i32 : i32 to index
    %c0_49 = arith.constant 0 : index
    %121 = vector.load %arg8[%120, %c0_49] : memref<10x128xf32, #tpu.memory_space<vmem>>, vector<1x128xf32>
    tpu.vector_store %arg8[%120, %c0_49], %119 {strides = array<i32>} : memref<10x128xf32, #tpu.memory_space<vmem>>, vector<1x128xf32>,
    %c4_i32 = arith.constant 4 : i32
    %122 = vector.broadcast %c4_i32 : i32 to vector<8x128xi32>
    %123 = arith.cmpi eq, %28, %122 : vector<8x128xi32>
    %cst_50 = arith.constant 1.000000e+00 : f32
    %cst_51 = arith.constant 0.000000e+00 : f32
    %124 = vector.broadcast %cst_50 : f32 to vector<8x128xf32>
    %125 = vector.broadcast %cst_51 : f32 to vector<8x128xf32>
    %126 = arith.select %123, %124, %125 : vector<8x128xi1>, vector<8x128xf32>
    %cst_52 = arith.constant dense<0.000000e+00> : vector<128xf32>
    %127 = vector.multi_reduction <add>, %126, %cst_52 [0] : vector<8x128xf32> to vector<128xf32>
    %128 = vector.shape_cast %127 : vector<128xf32> to vector<1x128xf32>
    %129 = arith.index_cast %c4_i32 : i32 to index
    %c0_53 = arith.constant 0 : index
    %130 = vector.load %arg7[%129, %c0_53] : memref<10x128xf32, #tpu.memory_space<vmem>>, vector<1x128xf32>
    tpu.vector_store %arg7[%129, %c0_53], %128 {strides = array<i32>} : memref<10x128xf32, #tpu.memory_space<vmem>>, vector<1x128xf32>,
    %cst_54 = arith.constant 0.000000e+00 : f32
    %131 = vector.broadcast %cst_54 : f32 to vector<8x128xf32>
    %132 = arith.select %123, %16, %131 : vector<8x128xi1>, vector<8x128xf32>
    %cst_55 = arith.constant dense<0.000000e+00> : vector<128xf32>
    %133 = vector.multi_reduction <add>, %132, %cst_55 [0] : vector<8x128xf32> to vector<128xf32>
    %134 = vector.shape_cast %133 : vector<128xf32> to vector<1x128xf32>
    %135 = arith.index_cast %c4_i32 : i32 to index
    %c0_56 = arith.constant 0 : index
    %136 = vector.load %arg8[%135, %c0_56] : memref<10x128xf32, #tpu.memory_space<vmem>>, vector<1x128xf32>
    tpu.vector_store %arg8[%135, %c0_56], %134 {strides = array<i32>} : memref<10x128xf32, #tpu.memory_space<vmem>>, vector<1x128xf32>,
    %c5_i32 = arith.constant 5 : i32
    %137 = vector.broadcast %c5_i32 : i32 to vector<8x128xi32>
    %138 = arith.cmpi eq, %28, %137 : vector<8x128xi32>
    %cst_57 = arith.constant 1.000000e+00 : f32
    %cst_58 = arith.constant 0.000000e+00 : f32
    %139 = vector.broadcast %cst_57 : f32 to vector<8x128xf32>
    %140 = vector.broadcast %cst_58 : f32 to vector<8x128xf32>
    %141 = arith.select %138, %139, %140 : vector<8x128xi1>, vector<8x128xf32>
    %cst_59 = arith.constant dense<0.000000e+00> : vector<128xf32>
    %142 = vector.multi_reduction <add>, %141, %cst_59 [0] : vector<8x128xf32> to vector<128xf32>
    %143 = vector.shape_cast %142 : vector<128xf32> to vector<1x128xf32>
    %144 = arith.index_cast %c5_i32 : i32 to index
    %c0_60 = arith.constant 0 : index
    %145 = vector.load %arg7[%144, %c0_60] : memref<10x128xf32, #tpu.memory_space<vmem>>, vector<1x128xf32>
    tpu.vector_store %arg7[%144, %c0_60], %143 {strides = array<i32>} : memref<10x128xf32, #tpu.memory_space<vmem>>, vector<1x128xf32>,
    %cst_61 = arith.constant 0.000000e+00 : f32
    %146 = vector.broadcast %cst_61 : f32 to vector<8x128xf32>
    %147 = arith.select %138, %16, %146 : vector<8x128xi1>, vector<8x128xf32>
    %cst_62 = arith.constant dense<0.000000e+00> : vector<128xf32>
    %148 = vector.multi_reduction <add>, %147, %cst_62 [0] : vector<8x128xf32> to vector<128xf32>
    %149 = vector.shape_cast %148 : vector<128xf32> to vector<1x128xf32>
    %150 = arith.index_cast %c5_i32 : i32 to index
    %c0_63 = arith.constant 0 : index
    %151 = vector.load %arg8[%150, %c0_63] : memref<10x128xf32, #tpu.memory_space<vmem>>, vector<1x128xf32>
    tpu.vector_store %arg8[%150, %c0_63], %149 {strides = array<i32>} : memref<10x128xf32, #tpu.memory_space<vmem>>, vector<1x128xf32>,
    %c6_i32 = arith.constant 6 : i32
    %152 = vector.broadcast %c6_i32 : i32 to vector<8x128xi32>
    %153 = arith.cmpi eq, %28, %152 : vector<8x128xi32>
    %cst_64 = arith.constant 1.000000e+00 : f32
    %cst_65 = arith.constant 0.000000e+00 : f32
    %154 = vector.broadcast %cst_64 : f32 to vector<8x128xf32>
    %155 = vector.broadcast %cst_65 : f32 to vector<8x128xf32>
    %156 = arith.select %153, %154, %155 : vector<8x128xi1>, vector<8x128xf32>
    %cst_66 = arith.constant dense<0.000000e+00> : vector<128xf32>
    %157 = vector.multi_reduction <add>, %156, %cst_66 [0] : vector<8x128xf32> to vector<128xf32>
    %158 = vector.shape_cast %157 : vector<128xf32> to vector<1x128xf32>
    %159 = arith.index_cast %c6_i32 : i32 to index
    %c0_67 = arith.constant 0 : index
    %160 = vector.load %arg7[%159, %c0_67] : memref<10x128xf32, #tpu.memory_space<vmem>>, vector<1x128xf32>
    tpu.vector_store %arg7[%159, %c0_67], %158 {strides = array<i32>} : memref<10x128xf32, #tpu.memory_space<vmem>>, vector<1x128xf32>,
    %cst_68 = arith.constant 0.000000e+00 : f32
    %161 = vector.broadcast %cst_68 : f32 to vector<8x128xf32>
    %162 = arith.select %153, %16, %161 : vector<8x128xi1>, vector<8x128xf32>
    %cst_69 = arith.constant dense<0.000000e+00> : vector<128xf32>
    %163 = vector.multi_reduction <add>, %162, %cst_69 [0] : vector<8x128xf32> to vector<128xf32>
    %164 = vector.shape_cast %163 : vector<128xf32> to vector<1x128xf32>
    %165 = arith.index_cast %c6_i32 : i32 to index
    %c0_70 = arith.constant 0 : index
    %166 = vector.load %arg8[%165, %c0_70] : memref<10x128xf32, #tpu.memory_space<vmem>>, vector<1x128xf32>
    tpu.vector_store %arg8[%165, %c0_70], %164 {strides = array<i32>} : memref<10x128xf32, #tpu.memory_space<vmem>>, vector<1x128xf32>,
    %c7_i32 = arith.constant 7 : i32
    %167 = vector.broadcast %c7_i32 : i32 to vector<8x128xi32>
    %168 = arith.cmpi eq, %28, %167 : vector<8x128xi32>
    %cst_71 = arith.constant 1.000000e+00 : f32
    %cst_72 = arith.constant 0.000000e+00 : f32
    %169 = vector.broadcast %cst_71 : f32 to vector<8x128xf32>
    %170 = vector.broadcast %cst_72 : f32 to vector<8x128xf32>
    %171 = arith.select %168, %169, %170 : vector<8x128xi1>, vector<8x128xf32>
    %cst_73 = arith.constant dense<0.000000e+00> : vector<128xf32>
    %172 = vector.multi_reduction <add>, %171, %cst_73 [0] : vector<8x128xf32> to vector<128xf32>
    %173 = vector.shape_cast %172 : vector<128xf32> to vector<1x128xf32>
    %174 = arith.index_cast %c7_i32 : i32 to index
    %c0_74 = arith.constant 0 : index
    %175 = vector.load %arg7[%174, %c0_74] : memref<10x128xf32, #tpu.memory_space<vmem>>, vector<1x128xf32>
    tpu.vector_store %arg7[%174, %c0_74], %173 {strides = array<i32>} : memref<10x128xf32, #tpu.memory_space<vmem>>, vector<1x128xf32>,
    %cst_75 = arith.constant 0.000000e+00 : f32
    %176 = vector.broadcast %cst_75 : f32 to vector<8x128xf32>
    %177 = arith.select %168, %16, %176 : vector<8x128xi1>, vector<8x128xf32>
    %cst_76 = arith.constant dense<0.000000e+00> : vector<128xf32>
    %178 = vector.multi_reduction <add>, %177, %cst_76 [0] : vector<8x128xf32> to vector<128xf32>
    %179 = vector.shape_cast %178 : vector<128xf32> to vector<1x128xf32>
    %180 = arith.index_cast %c7_i32 : i32 to index
    %c0_77 = arith.constant 0 : index
    %181 = vector.load %arg8[%180, %c0_77] : memref<10x128xf32, #tpu.memory_space<vmem>>, vector<1x128xf32>
    tpu.vector_store %arg8[%180, %c0_77], %179 {strides = array<i32>} : memref<10x128xf32, #tpu.memory_space<vmem>>, vector<1x128xf32>,
    %c8_i32 = arith.constant 8 : i32
    %182 = vector.broadcast %c8_i32 : i32 to vector<8x128xi32>
    %183 = arith.cmpi eq, %28, %182 : vector<8x128xi32>
    %cst_78 = arith.constant 1.000000e+00 : f32
    %cst_79 = arith.constant 0.000000e+00 : f32
    %184 = vector.broadcast %cst_78 : f32 to vector<8x128xf32>
    %185 = vector.broadcast %cst_79 : f32 to vector<8x128xf32>
    %186 = arith.select %183, %184, %185 : vector<8x128xi1>, vector<8x128xf32>
    %cst_80 = arith.constant dense<0.000000e+00> : vector<128xf32>
    %187 = vector.multi_reduction <add>, %186, %cst_80 [0] : vector<8x128xf32> to vector<128xf32>
    %188 = vector.shape_cast %187 : vector<128xf32> to vector<1x128xf32>
    %189 = arith.index_cast %c8_i32 : i32 to index
    %c0_81 = arith.constant 0 : index
    %190 = vector.load %arg7[%189, %c0_81] : memref<10x128xf32, #tpu.memory_space<vmem>>, vector<1x128xf32>
    tpu.vector_store %arg7[%189, %c0_81], %188 {strides = array<i32>} : memref<10x128xf32, #tpu.memory_space<vmem>>, vector<1x128xf32>,
    %cst_82 = arith.constant 0.000000e+00 : f32
    %191 = vector.broadcast %cst_82 : f32 to vector<8x128xf32>
    %192 = arith.select %183, %16, %191 : vector<8x128xi1>, vector<8x128xf32>
    %cst_83 = arith.constant dense<0.000000e+00> : vector<128xf32>
    %193 = vector.multi_reduction <add>, %192, %cst_83 [0] : vector<8x128xf32> to vector<128xf32>
    %194 = vector.shape_cast %193 : vector<128xf32> to vector<1x128xf32>
    %195 = arith.index_cast %c8_i32 : i32 to index
    %c0_84 = arith.constant 0 : index
    %196 = vector.load %arg8[%195, %c0_84] : memref<10x128xf32, #tpu.memory_space<vmem>>, vector<1x128xf32>
    tpu.vector_store %arg8[%195, %c0_84], %194 {strides = array<i32>} : memref<10x128xf32, #tpu.memory_space<vmem>>, vector<1x128xf32>,
    %c9_i32_85 = arith.constant 9 : i32
    %197 = vector.broadcast %c9_i32_85 : i32 to vector<8x128xi32>
    %198 = arith.cmpi eq, %28, %197 : vector<8x128xi32>
    %cst_86 = arith.constant 1.000000e+00 : f32
    %cst_87 = arith.constant 0.000000e+00 : f32
    %199 = vector.broadcast %cst_86 : f32 to vector<8x128xf32>
    %200 = vector.broadcast %cst_87 : f32 to vector<8x128xf32>
    %201 = arith.select %198, %199, %200 : vector<8x128xi1>, vector<8x128xf32>
    %cst_88 = arith.constant dense<0.000000e+00> : vector<128xf32>
    %202 = vector.multi_reduction <add>, %201, %cst_88 [0] : vector<8x128xf32> to vector<128xf32>
    %203 = vector.shape_cast %202 : vector<128xf32> to vector<1x128xf32>
    %204 = arith.index_cast %c9_i32_85 : i32 to index
    %c0_89 = arith.constant 0 : index
    %205 = vector.load %arg7[%204, %c0_89] : memref<10x128xf32, #tpu.memory_space<vmem>>, vector<1x128xf32>
    tpu.vector_store %arg7[%204, %c0_89], %203 {strides = array<i32>} : memref<10x128xf32, #tpu.memory_space<vmem>>, vector<1x128xf32>,
    %cst_90 = arith.constant 0.000000e+00 : f32
    %206 = vector.broadcast %cst_90 : f32 to vector<8x128xf32>
    %207 = arith.select %198, %16, %206 : vector<8x128xi1>, vector<8x128xf32>
    %cst_91 = arith.constant dense<0.000000e+00> : vector<128xf32>
    %208 = vector.multi_reduction <add>, %207, %cst_91 [0] : vector<8x128xf32> to vector<128xf32>
    %209 = vector.shape_cast %208 : vector<128xf32> to vector<1x128xf32>
    %210 = arith.index_cast %c9_i32_85 : i32 to index
    %c0_92 = arith.constant 0 : index
    %211 = vector.load %arg8[%210, %c0_92] : memref<10x128xf32, #tpu.memory_space<vmem>>, vector<1x128xf32>
    tpu.vector_store %arg8[%210, %c0_92], %209 {strides = array<i32>} : memref<10x128xf32, #tpu.memory_space<vmem>>, vector<1x128xf32>,
    %c10_i32 = arith.constant 10 : i32
    %c0_93 = arith.constant 0 : index
    %c0_94 = arith.constant 0 : index
    %c0_95 = arith.constant 0 : index
    %212 = vector.load %arg4[%c0_93, %c0_94, %c0_95] : memref<1x10x128xf32, #tpu.memory_space<vmem>>, vector<1x10x128xf32>
    %213 = vector.shape_cast %212 : vector<1x10x128xf32> to vector<10x128xf32>
    %c0_96 = arith.constant 0 : index
    %c0_97 = arith.constant 0 : index
    %214 = vector.load %arg7[%c0_96, %c0_97] : memref<10x128xf32, #tpu.memory_space<vmem>>, vector<10x128xf32>
    %215 = arith.addf %213, %214 : vector<10x128xf32>
    %c0_98 = arith.constant 0 : index
    %c0_99 = arith.constant 0 : index
    %c0_100 = arith.constant 0 : index
    %216 = vector.load %arg4[%c0_98, %c0_99, %c0_100] : memref<1x10x128xf32, #tpu.memory_space<vmem>>, vector<1x10x128xf32>
    %217 = vector.shape_cast %216 : vector<1x10x128xf32> to vector<10x128xf32>
    %218 = vector.shape_cast %215 : vector<10x128xf32> to vector<1x10x128xf32>
    tpu.vector_store %arg4[%c0_98, %c0_99, %c0_100], %218 {strides = array<i32>} : memref<1x10x128xf32, #tpu.memory_space<vmem>>, vector<1x10x128xf32>,
    %c0_101 = arith.constant 0 : index
    %c0_102 = arith.constant 0 : index
    %c0_103 = arith.constant 0 : index
    %219 = vector.load %arg6[%c0_101, %c0_102, %c0_103] : memref<1x10x128xf32, #tpu.memory_space<vmem>>, vector<1x10x128xf32>
    %220 = vector.shape_cast %219 : vector<1x10x128xf32> to vector<10x128xf32>
    %c0_104 = arith.constant 0 : index
    %c0_105 = arith.constant 0 : index
    %221 = vector.load %arg8[%c0_104, %c0_105] : memref<10x128xf32, #tpu.memory_space<vmem>>, vector<10x128xf32>
    %222 = arith.addf %220, %221 : vector<10x128xf32>
    %c0_106 = arith.constant 0 : index
    %c0_107 = arith.constant 0 : index
    %c0_108 = arith.constant 0 : index
    %223 = vector.load %arg6[%c0_106, %c0_107, %c0_108] : memref<1x10x128xf32, #tpu.memory_space<vmem>>, vector<1x10x128xf32>
    %224 = vector.shape_cast %223 : vector<1x10x128xf32> to vector<10x128xf32>
    %225 = vector.shape_cast %222 : vector<10x128xf32> to vector<1x10x128xf32>
    tpu.vector_store %arg6[%c0_106, %c0_107, %c0_108], %225 {strides = array<i32>} : memref<1x10x128xf32, #tpu.memory_space<vmem>>, vector<1x10x128xf32>,
    return
  }
  func.func @transform_0(%arg0: i32, %arg1: i32) -> (i32, i32) {
    %c1_i32 = arith.constant 1 : i32
    %0 = arith.muli %arg0, %c1_i32 : i32
    %1 = arith.addi %0, %arg1 : i32
    %c0_i32 = arith.constant 0 : i32
    %c0_i32_0 = arith.constant 0 : i32
    return %1, %c0_i32 : i32, i32
  }
  func.func @transform_1(%arg0: i32, %arg1: i32) -> (i32, i32) {
    %c1_i32 = arith.constant 1 : i32
    %0 = arith.muli %arg0, %c1_i32 : i32
    %1 = arith.addi %0, %arg1 : i32
    %c0_i32 = arith.constant 0 : i32
    %c0_i32_0 = arith.constant 0 : i32
    return %1, %c0_i32 : i32, i32
  }
  func.func @transform_2(%arg0: i32, %arg1: i32) -> (i32, i32, i32) {
    %c0_i32 = arith.constant 0 : i32
    %c0_i32_0 = arith.constant 0 : i32
    %c0_i32_1 = arith.constant 0 : i32
    return %arg0, %c0_i32, %c0_i32_0 : i32, i32, i32
  }
  func.func @transform_3(%arg0: i32, %arg1: i32) -> (i32, i32, i32) {
    %c0_i32 = arith.constant 0 : i32
    %c0_i32_0 = arith.constant 0 : i32
    %c0_i32_1 = arith.constant 0 : i32
    return %arg0, %c0_i32, %c0_i32_0 : i32, i32, i32
  }
  func.func @transform_4(%arg0: i32, %arg1: i32) -> (i32, i32, i32) {
    %c0_i32 = arith.constant 0 : i32
    %c0_i32_0 = arith.constant 0 : i32
    %c0_i32_1 = arith.constant 0 : i32
    return %arg0, %c0_i32, %c0_i32_0 : i32, i32, i32
  }
}

</mosaic_0001>

<llo_original>
// kernel: tpu_custom_call.1
$region0: #{tpu_custom_call.1}
  #allocation0 [shape = 'u32[]', space=smem, size = 0x4, offset = 0x4, fixed_abs, tag = 'smem constant byte address 0x4 - core index']
  #allocation1 [shape = 'u32[72,128]{1,0:T(1,128)}', space=vmem, size = 0x9000, scoped, tag = 'internal scratch']
  #allocation2 [shape = 'f32[10,128]{1,0:T(8,128)}', space=vmem, size = 0x2000, scoped, tag = 'scratch operand']
  #allocation3 [shape = 'f32[10,128]{1,0:T(8,128)}', space=vmem, size = 0x2000, scoped, tag = 'scratch operand']
  %s0 = inlined_call_operand.vmem [shape: f32[8,128], index: 0, kind: input, shape index: {}]
  %s1 = inlined_call_operand.vmem [shape: s32[8,1], index: 1, kind: input, shape index: {}]
  %s2 = inlined_call_operand.vmem [shape: f32[1,10,128], index: 2, kind: output, shape index: {0}]
  %s3 = inlined_call_operand.vmem [shape: f32[1,10,128], index: 3, kind: output, shape index: {1}]
  %s4 = inlined_call_operand.vmem [shape: f32[1,10,128], index: 4, kind: output, shape index: {2}]
  %5 = xla_tuple %s2, %s3, %s4
  %s6 = sld [smem:[#allocation0]]
  $region38: #{tpu_custom_call.1} parent=0
    _
  %s8 = ssub.s32 1, %s6
  %s9 = scalar_select 0, %s8, %s6
  // Predicated region
  $region2: #{tpu_custom_call.1} parent=0 // pred_check
    _
  $region3: #{tpu_custom_call.1} parent=0 // pred_check_branch
    %11 = sbr.rel (0) target = $region5
  $region4: #{tpu_custom_call.1} parent=0 // pred_region
    %s12 = sadd.s32 0, 0
    %p13 = scmp.lt.s32.totalorder %s12, 0
    %s14 = scalar_select %p13, %s12, 0
    %s15 = smul.addr %s14, 8
    %s16 = scalar_lea.vmem %s0, %s15
    %s17 = sadd.s32 0, 0
  $region5: #{tpu_custom_call.1} parent=0 // pred_fallthru
    _
  // Predicated region
  $region6: #{tpu_custom_call.1} parent=0 // pred_check
    _
  $region7: #{tpu_custom_call.1} parent=0 // pred_check_branch
    %19 = sbr.rel (0) target = $region9
  $region8: #{tpu_custom_call.1} parent=0 // pred_region
    %s20 = sadd.s32 0, 0
    %p21 = scmp.lt.s32.totalorder %s20, 0
    %s22 = scalar_select %p21, %s20, 0
    %s23 = smul.addr %s22, 8
    %s24 = scalar_lea.vmem %s1, %s23
    %s25 = sadd.s32 0, 0
  $region9: #{tpu_custom_call.1} parent=0 // pred_fallthru
    _
  %s26 = sadd.s32 0, 0
  %p27 = scmp.lt.s32.totalorder %s26, 0
  %s28 = scalar_select %p27, %s26, 0
  %s29 = smul.addr %s28, 8
  %s30 = scalar_lea.vmem %s0, %s29
  %s31 = sadd.s32 0, 0
  %p32 = scmp.lt.s32.totalorder %s31, 0
  %s33 = scalar_select %p32, %s31, 0
  %s34 = smul.addr %s33, 8
  %s35 = scalar_lea.vmem %s1, %s34
  %s36 = sadd.s32 0, 0
  %p37 = scmp.lt.s32.totalorder %s36, 0
  %s38 = scalar_select %p37, %s36, 0
  %s39 = smul.addr %s38, 8
  %s40 = scalar_lea.vmem %s0, %s39
  %s41 = sadd.s32 0, 0
  %s42 = sadd.s32 0, 0
  %p43 = scmp.lt.s32.totalorder %s42, 0
  %s44 = scalar_select %p43, %s42, 0
  %s45 = smul.addr %s44, 8
  %s46 = scalar_lea.vmem %s1, %s45
  %s47 = sadd.s32 0, 0
  %p49 = scmp.eq.s32.totalorder 0, 0
  // Predicated region
  $region10: #{tpu_custom_call.1} parent=0 // pred_check
    %p50 = pneg %p49
  $region11: #{tpu_custom_call.1} parent=0 // pred_check_branch
    %52 = sbr.rel (%p50) target = $region13
  $region12: #{tpu_custom_call.1} parent=0 // pred_region
    %53 = vst [vmem:[%s2] sm:$0xff] 0.0
    %54 = vst [vmem:[%s2 + $0x8] sm:$0x3] 0.0
    %55 = vst [vmem:[%s3] sm:$0xff] 0.0
    %56 = vst [vmem:[%s3 + $0x8] sm:$0x3] 0.0
    %57 = vst [vmem:[%s4] sm:$0xff] 0.0
    %58 = vst [vmem:[%s4 + $0x8] sm:$0x3] 0.0
  $region13: #{tpu_custom_call.1} parent=0 // pred_fallthru
    _
  %v59 = vld [vmem:[%s40] sm:$0xff]
  %v60 = vld [vmem:[%s46] sm:$0xff]
  %vm61 = vcmp.ge.s32.totalorder %v60, 0
  %62 = vmax.xlane.f32.xlu0 %v59
  %v63 = vpop.xlane.xlu0 %62
  %v64 = vsub.f32 %v59, %v63
  %v65 = vmul.f32 %v64, 1.442695
  %v66 = vpow.pop %v65
  %67 = vadd.xlane.f32.xlu0 %v66
  %v68 = vpop.xlane.xlu0 %67
  %v69 = vrcp.pop %v68
  %v70 = vmul.f32 %v68, %v69
  %v71 = vsub.f32 1.0, %v70
  %v72 = vmul.f32 %v69, %v71
  %v73 = vadd.f32 %v69, %v72
  %vm74 = vweird.f32 %v68
  %vm75 = vweird.f32 %v69
  %vm76 = vmor %vm74, %vm75
  %v77 = vsel %vm76, %v69, %v73
  %v78 = vand.u32 2147483647, %v68
  %vm79 = vcmp.eq.f32.partialorder %v78, 8.507059e+37
  %v80 = vand.u32 %v68, 2147483648
  %v81 = vor.u32 1.1754944e-38, %v80
  %v82 = vsel %vm79, %v81, %v77
  %v83 = vmul.f32 %v66, %v82
  %v84 = vmul.f32 %v83, 10.0
  %v85 = vceil.f32 %v84
  %v86 = vcvt.f32.s32.to.zero.pseudo %v85
  %v87 = vsub.s32 %v86, 1
  %vm88 = vcmp.lt.s32.totalorder %v87, 9
  %v89 = vsel %vm88, %v87, 9
  %v90 = vsel %vm61, 1, 0
  %91 = vset.pattern.permute.xlu0 0
  %92 = vperm.xlu0 %91, %v90
  %v93 = vpop.permute.xlu0 %92
  %vm94 = vcmp.eq.s32.totalorder %v93, 1
  %v95 = vsel %vm94, %v89, 4294967295
  %v96 = vlaneseq
  %v97 = vand.u32 %v96, 127
  %98 = vset.pattern.permute.xlu0 0
  %99 = vperm.xlu0 %98, %v60
  %v100 = vpop.permute.xlu0 %99
  %vm101 = vcmp.eq.s32.totalorder %v97, %v100
  %v102 = vsel %vm101, %v83, 0.0
  %103 = vadd.xlane.f32.xlu0 %v102
  %v104 = vpop.xlane.xlu0 %103
  %v105 = vmul.f32 %v104, 10.0
  %v106 = vceil.f32 %v105
  %v107 = vcvt.f32.s32.to.zero.pseudo %v106
  %v108 = vsub.s32 %v107, 1
  %vm109 = vcmp.lt.s32.totalorder %v108, 9
  %v110 = vsel %vm109, %v108, 9
  %v111 = vsel %vm61, %v110, 4294967295
  %112 = vset.pattern.permute.xlu0 0
  %113 = vperm.xlu0 %112, %v111
  %v114 = vpop.permute.xlu0 %113
  %vm115 = vcmp.eq.s32.totalorder %v97, %v114
  %v116 = vsel %vm115, 1, 0
  %v117 = vcvt.s32.f32 %v116
  %v118 = vpack.c.bf16 %v117, %v117
  %v119 = vsel %vm101, 1, 0
  %v120 = vcvt.s32.f32 %v119
  %v121 = vpack.c.bf16 %v120, %v120
  %v122 = vld [vmem:[%s3] sm:$0xff]
  %v123 = vld [vmem:[%s3 + $0x8] sm:$0x3]
  %124 = vxpose.xlu0.c.b16.start [1/8] %v118, 128
  %125 = vxpose.xlu0.c.b16.cont [2/8] 0, 128
  %126 = vxpose.xlu0.c.b16.cont [3/8] 0, 128
  %127 = vxpose.xlu0.c.b16.cont [4/8] 0, 128
  %128 = vxpose.xlu0.c.b16.cont [5/8] 0, 128
  %129 = vxpose.xlu0.c.b16.cont [6/8] 0, 128
  %130 = vxpose.xlu0.c.b16.cont [7/8] 0, 128
  %131 = vxpose.xlu0.c.b16.end [8/8] 0, 128
  %v132 = vpop.trf.xlu0
  %v133 = vpop.trf.xlu0
  %v134 = vpop.trf.xlu0
  %v135 = vpop.trf.xlu0
  %v136 = vpop.trf.xlu0
  %v137 = vpop.trf.xlu0
  %v138 = vpop.trf.xlu0
  %v139 = vpop.trf.xlu0
  %vm140 = vcmask 64512
  %v142 = vsel %vm140, %v132, 0
  %vm144 = vcmask 1043456
  %v146 = vsel %vm144, %v121, 0
  %148 = vmatpush.bf16.msra.mxu0 0
  %149 = vmatpush.bf16.msra.mxu0 0
  %150 = vmatpush.bf16.msra.mxu0 0
  %151 = vmatpush.bf16.msra.mxu0 0
  %152 = vmatpush.bf16.msra.mxu0 0
  %153 = vmatpush.bf16.msra.mxu0 0
  %154 = vmatpush.bf16.msra.mxu0 0
  %155 = vmatpush.bf16.msra.mxu0 %v146
  %156 = vmatmul.bf16.gmra.mxu0 %v142
  %v157 = vpop.f32.mrf.mxu0
  %v158 = vadd.f32 0.0, %v157
  %v159 = vpop.f32.mrf.mxu0
  %v160 = vadd.f32 0.0, %v159
  %161 = vdwg.mxu0
  %v162 = vadd.f32 %v122, %v158
  %v163 = vadd.f32 %v123, %v160
  %164 = vst [vmem:[%s3] sm:$0xff] %v162
  %165 = vst [vmem:[%s3 + $0x8] sm:$0x3] %v163
  %vm166 = vcmp.eq.s32.totalorder %v95, 0
  %v167 = vsel %vm166, 1.0, 0.0
  %v168 = vrot.slane %v167, 4
  %v169 = vadd.f32 %v167, %v168
  %v170 = vrot.slane %v169, 2
  %v171 = vadd.f32 %v169, %v170
  %v172 = vrot.slane %v171, 1
  %v173 = vadd.f32 %v171, %v172
  %174 = vst [vmem:[#allocation2] sm:$0x1] %v173
  %v175 = vsel %vm166, %v83, 0.0
  %v176 = vrot.slane %v175, 4
  %v177 = vadd.f32 %v175, %v176
  %v178 = vrot.slane %v177, 2
  %v179 = vadd.f32 %v177, %v178
  %v180 = vrot.slane %v179, 1
  %v181 = vadd.f32 %v179, %v180
  %182 = vst [vmem:[#allocation3] sm:$0x1] %v181
  %vm183 = vcmp.eq.s32.totalorder %v95, 1
  %v184 = vsel %vm183, 1.0, 0.0
  %v185 = vrot.slane %v184, 4
  %v186 = vadd.f32 %v184, %v185
  %v187 = vrot.slane %v186, 2
  %v188 = vadd.f32 %v186, %v187
  %v189 = vrot.slane %v188, 1
  %v190 = vadd.f32 %v188, %v189
  %191 = vst [vmem:[#allocation2 + $0x1] sm:$0x1] %v190
  %v192 = vsel %vm183, %v83, 0.0
  %v193 = vrot.slane %v192, 4
  %v194 = vadd.f32 %v192, %v193
  %v195 = vrot.slane %v194, 2
  %v196 = vadd.f32 %v194, %v195
  %v197 = vrot.slane %v196, 1
  %v198 = vadd.f32 %v196, %v197
  %199 = vst [vmem:[#allocation3 + $0x1] sm:$0x1] %v198
  %vm200 = vcmp.eq.s32.totalorder %v95, 2
  %v201 = vsel %vm200, 1.0, 0.0
  %v202 = vrot.slane %v201, 4
  %v203 = vadd.f32 %v201, %v202
  %v204 = vrot.slane %v203, 2
  %v205 = vadd.f32 %v203, %v204
  %v206 = vrot.slane %v205, 1
  %v207 = vadd.f32 %v205, %v206
  %208 = vst [vmem:[#allocation2 + $0x2] sm:$0x1] %v207
  %v209 = vsel %vm200, %v83, 0.0
  %v210 = vrot.slane %v209, 4
  %v211 = vadd.f32 %v209, %v210
  %v212 = vrot.slane %v211, 2
  %v213 = vadd.f32 %v211, %v212
  %v214 = vrot.slane %v213, 1
  %v215 = vadd.f32 %v213, %v214
  %216 = vst [vmem:[#allocation3 + $0x2] sm:$0x1] %v215
  %vm217 = vcmp.eq.s32.totalorder %v95, 3
  %v218 = vsel %vm217, 1.0, 0.0
  %v219 = vrot.slane %v218, 4
  %v220 = vadd.f32 %v218, %v219
  %v221 = vrot.slane %v220, 2
  %v222 = vadd.f32 %v220, %v221
  %v223 = vrot.slane %v222, 1
  %v224 = vadd.f32 %v222, %v223
  %225 = vst [vmem:[#allocation2 + $0x3] sm:$0x1] %v224
  %v226 = vsel %vm217, %v83, 0.0
  %v227 = vrot.slane %v226, 4
  %v228 = vadd.f32 %v226, %v227
  %v229 = vrot.slane %v228, 2
  %v230 = vadd.f32 %v228, %v229
  %v231 = vrot.slane %v230, 1
  %v232 = vadd.f32 %v230, %v231
  %233 = vst [vmem:[#allocation3 + $0x3] sm:$0x1] %v232
  %vm234 = vcmp.eq.s32.totalorder %v95, 4
  %v235 = vsel %vm234, 1.0, 0.0
  %v236 = vrot.slane %v235, 4
  %v237 = vadd.f32 %v235, %v236
  %v238 = vrot.slane %v237, 2
  %v239 = vadd.f32 %v237, %v238
  %v240 = vrot.slane %v239, 1
  %v241 = vadd.f32 %v239, %v240
  %242 = vst [vmem:[#allocation2 + $0x4] sm:$0x1] %v241
  %v243 = vsel %vm234, %v83, 0.0
  %v244 = vrot.slane %v243, 4
  %v245 = vadd.f32 %v243, %v244
  %v246 = vrot.slane %v245, 2
  %v247 = vadd.f32 %v245, %v246
  %v248 = vrot.slane %v247, 1
  %v249 = vadd.f32 %v247, %v248
  %250 = vst [vmem:[#allocation3 + $0x4] sm:$0x1] %v249
  %vm251 = vcmp.eq.s32.totalorder %v95, 5
  %v252 = vsel %vm251, 1.0, 0.0
  %v253 = vrot.slane %v252, 4
  %v254 = vadd.f32 %v252, %v253
  %v255 = vrot.slane %v254, 2
  %v256 = vadd.f32 %v254, %v255
  %v257 = vrot.slane %v256, 1
  %v258 = vadd.f32 %v256, %v257
  %259 = vst [vmem:[#allocation2 + $0x5] sm:$0x1] %v258
  %v260 = vsel %vm251, %v83, 0.0
  %v261 = vrot.slane %v260, 4
  %v262 = vadd.f32 %v260, %v261
  %v263 = vrot.slane %v262, 2
  %v264 = vadd.f32 %v262, %v263
  %v265 = vrot.slane %v264, 1
  %v266 = vadd.f32 %v264, %v265
  %267 = vst [vmem:[#allocation3 + $0x5] sm:$0x1] %v266
  %vm268 = vcmp.eq.s32.totalorder %v95, 6
  %v269 = vsel %vm268, 1.0, 0.0
  %v270 = vrot.slane %v269, 4
  %v271 = vadd.f32 %v269, %v270
  %v272 = vrot.slane %v271, 2
  %v273 = vadd.f32 %v271, %v272
  %v274 = vrot.slane %v273, 1
  %v275 = vadd.f32 %v273, %v274
  %276 = vst [vmem:[#allocation2 + $0x6] sm:$0x1] %v275
  %v277 = vsel %vm268, %v83, 0.0
  %v278 = vrot.slane %v277, 4
  %v279 = vadd.f32 %v277, %v278
  %v280 = vrot.slane %v279, 2
  %v281 = vadd.f32 %v279, %v280
  %v282 = vrot.slane %v281, 1
  %v283 = vadd.f32 %v281, %v282
  %284 = vst [vmem:[#allocation3 + $0x6] sm:$0x1] %v283
  %vm285 = vcmp.eq.s32.totalorder %v95, 7
  %v286 = vsel %vm285, 1.0, 0.0
  %v287 = vrot.slane %v286, 4
  %v288 = vadd.f32 %v286, %v287
  %v289 = vrot.slane %v288, 2
  %v290 = vadd.f32 %v288, %v289
  %v291 = vrot.slane %v290, 1
  %v292 = vadd.f32 %v290, %v291
  %293 = vst [vmem:[#allocation2 + $0x7] sm:$0x1] %v292
  %v294 = vsel %vm285, %v83, 0.0
  %v295 = vrot.slane %v294, 4
  %v296 = vadd.f32 %v294, %v295
  %v297 = vrot.slane %v296, 2
  %v298 = vadd.f32 %v296, %v297
  %v299 = vrot.slane %v298, 1
  %v300 = vadd.f32 %v298, %v299
  %301 = vst [vmem:[#allocation3 + $0x7] sm:$0x1] %v300
  %vm302 = vcmp.eq.s32.totalorder %v95, 8
  %v303 = vsel %vm302, 1.0, 0.0
  %v304 = vrot.slane %v303, 4
  %v305 = vadd.f32 %v303, %v304
  %v306 = vrot.slane %v305, 2
  %v307 = vadd.f32 %v305, %v306
  %v308 = vrot.slane %v307, 1
  %v309 = vadd.f32 %v307, %v308
  %310 = vst [vmem:[#allocation2 + $0x8] sm:$0x1] %v309
  %v311 = vsel %vm302, %v83, 0.0
  %v312 = vrot.slane %v311, 4
  %v313 = vadd.f32 %v311, %v312
  %v314 = vrot.slane %v313, 2
  %v315 = vadd.f32 %v313, %v314
  %v316 = vrot.slane %v315, 1
  %v317 = vadd.f32 %v315, %v316
  %318 = vst [vmem:[#allocation3 + $0x8] sm:$0x1] %v317
  %vm319 = vcmp.eq.s32.totalorder %v95, 9
  %v320 = vsel %vm319, 1.0, 0.0
  %v321 = vrot.slane %v320, 4
  %v322 = vadd.f32 %v320, %v321
  %v323 = vrot.slane %v322, 2
  %v324 = vadd.f32 %v322, %v323
  %v325 = vrot.slane %v324, 1
  %v326 = vadd.f32 %v324, %v325
  %327 = vst [vmem:[#allocation2 + $0x9] sm:$0x1] %v326
  %v328 = vsel %vm319, %v83, 0.0
  %v329 = vrot.slane %v328, 4
  %v330 = vadd.f32 %v328, %v329
  %v331 = vrot.slane %v330, 2
  %v332 = vadd.f32 %v330, %v331
  %v333 = vrot.slane %v332, 1
  %v334 = vadd.f32 %v332, %v333
  %335 = vst [vmem:[#allocation3 + $0x9] sm:$0x1] %v334
  %v336 = vld [vmem:[%s2] sm:$0xff]
  %v337 = vld [vmem:[%s2 + $0x8] sm:$0x3]
  %v338 = vld [vmem:[#allocation2] sm:$0xff]
  %v339 = vld [vmem:[#allocation2 + $0x8] sm:$0x3]
  %v340 = vadd.f32 %v336, %v338
  %v341 = vadd.f32 %v337, %v339
  %342 = vst [vmem:[%s2] sm:$0xff] %v340
  %343 = vst [vmem:[%s2 + $0x8] sm:$0x3] %v341
  %v344 = vld [vmem:[%s4] sm:$0xff]
  %v345 = vld [vmem:[%s4 + $0x8] sm:$0x3]
  %v346 = vld [vmem:[#allocation3] sm:$0xff]
  %v347 = vld [vmem:[#allocation3 + $0x8] sm:$0x3]
  %v348 = vadd.f32 %v344, %v346
  %v349 = vadd.f32 %v345, %v347
  %350 = vst [vmem:[%s4] sm:$0xff] %v348
  %351 = vst [vmem:[%s4 + $0x8] sm:$0x3] %v349
  // Predicated region
  $region14: #{tpu_custom_call.1} parent=0 // pred_check
    _
  $region15: #{tpu_custom_call.1} parent=0 // pred_check_branch
    %353 = sbr.rel (0) target = $region17
  $region16: #{tpu_custom_call.1} parent=0 // pred_region
    _
  $region17: #{tpu_custom_call.1} parent=0 // pred_fallthru
    _
  // Predicated region
  $region18: #{tpu_custom_call.1} parent=0 // pred_check
    _
  $region19: #{tpu_custom_call.1} parent=0 // pred_check_branch
    %355 = sbr.rel (0) target = $region21
  $region20: #{tpu_custom_call.1} parent=0 // pred_region
    _
  $region21: #{tpu_custom_call.1} parent=0 // pred_fallthru
    _
  // Predicated region
  $region22: #{tpu_custom_call.1} parent=0 // pred_check
    _
  $region23: #{tpu_custom_call.1} parent=0 // pred_check_branch
    %357 = sbr.rel (0) target = $region25
  $region24: #{tpu_custom_call.1} parent=0 // pred_region
    _
  $region25: #{tpu_custom_call.1} parent=0 // pred_fallthru
    _
  // Predicated region
  $region26: #{tpu_custom_call.1} parent=0 // pred_check
    _
  $region27: #{tpu_custom_call.1} parent=0 // pred_check_branch
    %359 = sbr.rel (0) target = $region29
  $region28: #{tpu_custom_call.1} parent=0 // pred_region
    _
  $region29: #{tpu_custom_call.1} parent=0 // pred_fallthru
    _
  // Predicated region
  $region30: #{tpu_custom_call.1} parent=0 // pred_check
    _
  $region31: #{tpu_custom_call.1} parent=0 // pred_check_branch
    %361 = sbr.rel (0) target = $region33
  $region32: #{tpu_custom_call.1} parent=0 // pred_region
    _
  $region33: #{tpu_custom_call.1} parent=0 // pred_fallthru
    _
  // Predicated region
  $region34: #{tpu_custom_call.1} parent=0 // pred_check
    _
  $region35: #{tpu_custom_call.1} parent=0 // pred_check_branch
    %363 = sbr.rel (0) target = $region37
  $region36: #{tpu_custom_call.1} parent=0 // pred_region
    _
  $region37: #{tpu_custom_call.1} parent=0 // pred_fallthru
    _

</llo_original>
